<compile_context>
chip_gen: v6e
topology: v6e:2x2x1
jax: 0.10.0
libtpu: 0.0.40
codegen_flags: <defaults>
</compile_context>

<pallas_src>
import functools

import jax
import jax.numpy as jnp
from jax.experimental import pallas as pl
from jax.experimental.pallas import tpu as pltpu


def _round_up(v, m):
    return (v + m - 1) // m * m


def _pad2(a, rows, cols):
    pr, pc = rows - a.shape[0], cols - a.shape[1]
    return jnp.pad(a, ((0, pr), (0, pc))) if (pr or pc) else a


# ----------------------------------------------------------------------------
# Pallas kernel: K-blocked GIN aggregation + 2-layer MLP (+ parallel linear)
# ----------------------------------------------------------------------------
def _na_single_op_kernel(adj_ref, xk_ref, xrow_ref, w1_ref, b1_ref,
                         w2_ref, b2_ref, *rest, with_linear, eps):
    if with_linear:
        wl_ref, out_ref, acc_ref = rest
    else:
        out_ref, acc_ref = rest
        wl_ref = None

    k = pl.program_id(1)

    @pl.when(k == 0)
    def _():
        acc_ref[...] = jnp.zeros_like(acc_ref)

    # Neighbour aggregation: (TM,TK) bf16 @ (TK,Din) bf16 -> f32 accumulate.
    acc_ref[...] += jnp.dot(adj_ref[...], xk_ref[...],
                            preferred_element_type=jnp.float32)

    @pl.when(k == pl.num_programs(1) - 1)
    def _():
        x_row = xrow_ref[...]                         # (TM, Din) bf16
        x_f32 = x_row.astype(jnp.float32)

        # GIN combine: (1 + eps) * x + agg   (eps == 0 -> pure VPU add).
        if eps == 0.0:
            h = x_f32 + acc_ref[...]
        else:
            h = (1.0 + jnp.float32(eps)) * x_f32 + acc_ref[...]

        # MLP layer 1: Linear -> ReLU (bf16 operands, f32 accumulate/bias).
        h1 = jnp.dot(h.astype(jnp.bfloat16), w1_ref[...],
                     preferred_element_type=jnp.float32) + b1_ref[...]
        h1 = jnp.maximum(h1, 0.0)

        # MLP layer 2 (+ parallel linear as a second dot summed in f32;
        # bl is pre-folded into b2 in the wrapper).
        h2 = jnp.dot(h1.astype(jnp.bfloat16), w2_ref[...],
                     preferred_element_type=jnp.float32) + b2_ref[...]
        if with_linear:
            h2 = h2 + jnp.dot(x_row, wl_ref[...],
                              preferred_element_type=jnp.float32)

        out_ref[...] = h2.astype(out_ref.dtype)


# ----------------------------------------------------------------------------
# Generation-aware tile / VMEM-budget selection
# ----------------------------------------------------------------------------
def _select_tiles(n, din_p, dout_p, with_linear):
    n128 = _round_up(max(n, 1), 128)
    try:
        vmem_cap = int(pltpu.get_tpu_info().vmem_capacity_bytes)
    except Exception:
        vmem_cap = 64 << 20  # conservative fallback (v7x per-TC VMEM)
    budget = int(vmem_cap * 0.80)  # leave headroom for compiler scratch/sems

    def need_bytes(tm, tk):
        need = 2 * tm * tk * 2            # adj tile      (bf16, double-buffered)
        need += 2 * tk * din_p * 2        # x K-tile      (bf16, double-buffered)
        need += 2 * tm * din_p * 2        # x self row    (bf16, double-buffered)
        need += 2 * tm * dout_p * 4       # out tile      (f32,  double-buffered)
        need += tm * din_p * 4            # f32 agg accumulator (scratch)
        need += din_p * dout_p * 2        # w1 (bf16, single-buffered resident)
        need += dout_p * dout_p * 2       # w2
        if with_linear:
            need += din_p * dout_p * 2    # wl
        need += 2 * dout_p * 4            # b1, b2
        return need

    cands = [1024, 512, 256, 128]
    pairs = sorted(((tm, tk) for tm in cands for tk in cands
                    if tm <= n128 and tk <= n128),
                   key=lambda p: (p[0] * p[1], p[0]), reverse=True)
    tm, tk = 128, 128
    for cm, ck in pairs:
        if need_bytes(cm, ck) + (4 << 20) <= budget:
            tm, tk = cm, ck
            break
    need = need_bytes(tm, tk)
    vmem_limit = int(min(max(need + (4 << 20), 16 << 20), budget))
    return tm, tk, vmem_limit


# ----------------------------------------------------------------------------
# Wrapper
# ----------------------------------------------------------------------------
def na_single_op(x, edge_index, edge_weights, edge_attr, params, *,
                 with_linear=True, eps=0.0):
    """x: [N, in_dim] f32; edge_index: [2, E] int32 (row0=src, row1=dst);
    edge_weights: [E] f32; edge_attr unused (GINConv ignores it)."""
    del edge_attr  # unused by GINConv
    n, in_dim = x.shape
    out_dim = params["w2"].shape[1]

    din_p = _round_up(in_dim, 128)
    dout_p = _round_up(out_dim, 128)
    tm, tk, vmem_limit = _select_tiles(n, din_p, dout_p, with_linear)
    n_pad = _round_up(n, max(tm, tk))  # tm, tk are 128*2^k -> lcm = max

    # Dense weighted adjacency A[dst, src] (data-dependent scatter stays in JAX).
    # TODO(synk): for large sparse graphs replace the dense N^2 adjacency with a
    # scalar-prefetched CSR/edge-list gather kernel (traffic ~ E, not N^2).
    adj = (jnp.zeros((n_pad, n_pad), jnp.float32)
           .at[edge_index[1], edge_index[0]]
           .add(edge_weights.astype(jnp.float32))
           .astype(jnp.bfloat16))
    # TODO(synk): on v7x the adj tile could be stored/streamed as fp8 (e4m3) to
    # halve the dominant N^2 HBM stream; needs an edge-weight range check.

    x_p = _pad2(x, n_pad, din_p).astype(jnp.bfloat16)
    w1 = _pad2(params["w1"], din_p, dout_p).astype(jnp.bfloat16)
    b1 = _pad2(params["b1"], 1, dout_p).astype(jnp.float32)
    w2 = _pad2(params["w2"], dout_p, dout_p).astype(jnp.bfloat16)
    if with_linear:
        b2 = _pad2(params["b2"] + params["bl"], 1, dout_p).astype(jnp.float32)
        wl = _pad2(params["wl"], din_p, dout_p).astype(jnp.bfloat16)
    else:
        # with_linear=False: wl/bl are never shipped to the device.
        b2 = _pad2(params["b2"], 1, dout_p).astype(jnp.float32)
        wl = None

    grid = (n_pad // tm, n_pad // tk)
    kernel = functools.partial(_na_single_op_kernel,
                               with_linear=with_linear, eps=float(eps))

    def _resident(shape):
        # Constant-index residents: single-buffered to halve their VMEM cost.
        try:
            return pl.BlockSpec(shape, lambda i, k: (0, 0),
                                pipeline_mode=pl.Buffered(1))
        except TypeError:  # older jax without pipeline_mode kwarg
            return pl.BlockSpec(shape, lambda i, k: (0, 0))

    in_specs = [
        pl.BlockSpec((tm, tk), lambda i, k: (i, k)),       # adj block (streamed)
        pl.BlockSpec((tk, din_p), lambda i, k: (k, 0)),    # x contraction block
        pl.BlockSpec((tm, din_p), lambda i, k: (i, 0)),    # x self-term row tile
        _resident((din_p, dout_p)),                        # w1
        _resident((1, dout_p)),                            # b1
        _resident((dout_p, dout_p)),                       # w2
        _resident((1, dout_p)),                            # b2 (+ bl folded)
    ]
    args = [adj, x_p, x_p, w1, b1, w2, b2]
    if with_linear:
        in_specs.append(_resident((din_p, dout_p)))        # wl
        args.append(wl)

    out = pl.pallas_call(
        kernel,
        out_shape=jax.ShapeDtypeStruct((n_pad, dout_p), jnp.float32),
        grid=grid,
        in_specs=in_specs,
        out_specs=pl.BlockSpec((tm, dout_p), lambda i, k: (i, 0)),
        scratch_shapes=[pltpu.VMEM((tm, din_p), jnp.float32)],
        compiler_params=pltpu.CompilerParams(
            dimension_semantics=("parallel", "arbitrary"),
            vmem_limit_bytes=vmem_limit),
    )(*args)

    return out[:n, :out_dim]


# ----------------------------------------------------------------------------
# Deterministic parameter init (PyTorch-Linear-style uniform, synthetic)
# ----------------------------------------------------------------------------
def init_params(key, in_dim, out_dim):
    ks = jax.random.split(key, 6)
    u = lambda k, shape, fan_in: jax.random.uniform(
        k, shape, jnp.float32, -1.0 / jnp.sqrt(fan_in), 1.0 / jnp.sqrt(fan_in))
    return {
        "w1": u(ks[0], (in_dim, out_dim), in_dim),
        "b1": u(ks[1], (1, out_dim), in_dim),
        "w2": u(ks[2], (out_dim, out_dim), out_dim),
        "b2": u(ks[3], (1, out_dim), out_dim),
        "wl": u(ks[4], (in_dim, out_dim), in_dim),
        "bl": u(ks[5], (1, out_dim), in_dim),
    }


# ----------------------------------------------------------------------------
# References
# ----------------------------------------------------------------------------
def reference_f32(x, edge_index, edge_weights, params, with_linear, eps=0.0):
    n = x.shape[0]
    adj = jnp.zeros((n, n), jnp.float32).at[edge_index[1], edge_index[0]].add(edge_weights)
    h = (1.0 + eps) * x + adj @ x
    h = jnp.maximum(h @ params["w1"] + params["b1"], 0.0) @ params["w2"] + params["b2"]
    if with_linear:
        h = h + x @ params["wl"] + params["bl"]
    return h


def reference_bf16(x, edge_index, edge_weights, params, with_linear, eps=0.0):
    # Mirrors the kernel's bf16-operand / f32-accumulate numerics.
    q = lambda a: a.astype(jnp.bfloat16).astype(jnp.float32)
    n = x.shape[0]
    adj = q(jnp.zeros((n, n), jnp.float32)
            .at[edge_index[1], edge_index[0]].add(edge_weights))
    xb = q(x)
    if eps != 0.0:
        h = (1.0 + eps) * xb + adj @ xb
    else:
        h = xb + adj @ xb
    h1 = jnp.maximum(q(h) @ q(params["w1"]) + params["b1"], 0.0)
    h2 = q(h1) @ q(params["w2"]) + params["b2"]
    if with_linear:
        h2 = h2 + xb @ q(params["wl"]) + params["bl"]
    return h2


if __name__ == "__main__":
    key = jax.random.PRNGKey(0)
    k_x, k_e, k_w, k_a, k_p = jax.random.split(key, 5)

    num_nodes, num_edges = 16, 32
    in_dim, out_dim = 32, 32

    x = jax.random.normal(k_x, (num_nodes, in_dim), jnp.float32)
    edge_index = jax.random.randint(k_e, (2, num_edges), 0, num_nodes, jnp.int32)
    edge_weights = jax.random.uniform(k_w, (num_edges,), jnp.float32)
    edge_attr = jax.random.normal(k_a, (num_edges, 8), jnp.float32)  # unused by GIN

    params = init_params(k_p, in_dim, out_dim)

    for with_linear in (True, False):
        out = na_single_op(x, edge_index, edge_weights, edge_attr, params,
                           with_linear=with_linear)
        out = jax.block_until_ready(out)
        assert out.shape == (num_nodes, out_dim)

        ref_b = reference_bf16(x, edge_index, edge_weights, params, with_linear)
        ref_f = reference_f32(x, edge_index, edge_weights, params, with_linear)
        assert jnp.allclose(out, ref_b, atol=2e-3, rtol=2e-3), \
            f"mismatch vs bf16-mirrored reference (with_linear={with_linear})"
        assert jnp.allclose(out, ref_f, atol=8e-2, rtol=8e-2), \
            f"mismatch vs f32 reference (with_linear={with_linear})"

    print("KERNEL_OK")
</pallas_src>

<mosaic_0001>
module attributes {stable_mosaic.version = 11 : i64} {
  func.func @_na_single_op_kernel(%arg0: i32, %arg1: i32, %arg2: memref<128x128xbf16, #tpu.memory_space<vmem>>, %arg3: memref<128x128xbf16, #tpu.memory_space<vmem>>, %arg4: memref<128x128xbf16, #tpu.memory_space<vmem>>, %arg5: memref<128x128xbf16, #tpu.memory_space<vmem>>, %arg6: memref<1x128xf32, #tpu.memory_space<vmem>>, %arg7: memref<128x128xbf16, #tpu.memory_space<vmem>>, %arg8: memref<1x128xf32, #tpu.memory_space<vmem>>, %arg9: memref<128x128xbf16, #tpu.memory_space<vmem>>, %arg10: memref<128x128xf32, #tpu.memory_space<vmem>>, %arg11: memref<128x128xf32, #tpu.memory_space<vmem>>) attributes {dimension_semantics = [#tpu.dimension_semantics<parallel>, #tpu.dimension_semantics<arbitrary>], iteration_bounds = array<i64: 1, 1>, scalar_prefetch = 0 : i64, scratch_operands = 1 : i64, tpu.core_type = #tpu.core_type<tc>, window_params = [{transform_indices = @transform_0, window_bounds = array<i64: 128, 128>}, {transform_indices = @transform_1, window_bounds = array<i64: 128, 128>}, {transform_indices = @transform_2, window_bounds = array<i64: 128, 128>}, {pipeline_mode = #tpu.pipeline_mode<synchronous>, transform_indices = @transform_3, window_bounds = array<i64: 128, 128>}, {pipeline_mode = #tpu.pipeline_mode<synchronous>, transform_indices = @transform_4, window_bounds = array<i64: 1, 128>}, {pipeline_mode = #tpu.pipeline_mode<synchronous>, transform_indices = @transform_5, window_bounds = array<i64: 128, 128>}, {pipeline_mode = #tpu.pipeline_mode<synchronous>, transform_indices = @transform_6, window_bounds = array<i64: 1, 128>}, {pipeline_mode = #tpu.pipeline_mode<synchronous>, transform_indices = @transform_7, window_bounds = array<i64: 128, 128>}, {transform_indices = @transform_8, window_bounds = array<i64: 128, 128>}]} {
    %c0_i32 = arith.constant 0 : i32
    %0 = arith.cmpi eq, %arg1, %c0_i32 : i32
    %1 = arith.extui %0 : i1 to i32
    %c0_i32_0 = arith.constant 0 : i32
    %2 = arith.cmpi ne, %1, %c0_i32_0 : i32
    scf.if %2 {
      %cst_10 = arith.constant 0.000000e+00 : f32
      %12 = vector.broadcast %cst_10 : f32 to vector<128x128xf32>
      %c0_11 = arith.constant 0 : index
      %c0_12 = arith.constant 0 : index
      %13 = vector.load %arg11[%c0_11, %c0_12] : memref<128x128xf32, #tpu.memory_space<vmem>>, vector<128x128xf32>
      tpu.vector_store %arg11[%c0_11, %c0_12], %12 {strides = array<i32>} : memref<128x128xf32, #tpu.memory_space<vmem>>, vector<128x128xf32>,
    } else {
    }
    %c0 = arith.constant 0 : index
    %c0_1 = arith.constant 0 : index
    %3 = vector.load %arg11[%c0, %c0_1] : memref<128x128xf32, #tpu.memory_space<vmem>>, vector<128x128xf32>
    %c0_2 = arith.constant 0 : index
    %c0_3 = arith.constant 0 : index
    %4 = vector.load %arg2[%c0_2, %c0_3] : memref<128x128xbf16, #tpu.memory_space<vmem>>, vector<128x128xbf16>
    %c0_4 = arith.constant 0 : index
    %c0_5 = arith.constant 0 : index
    %5 = vector.load %arg3[%c0_4, %c0_5] : memref<128x128xbf16, #tpu.memory_space<vmem>>, vector<128x128xbf16>
    %cst = arith.constant dense<0.000000e+00> : vector<128x128xf32>
    %6 = tpu.matmul %4, %5, %cst {dimension_numbers = #tpu.dot_dimension_numbers<[1], [0], [0], [1], [0, 0, 1, 1], [], []>} : vector<128x128xbf16>, vector<128x128xbf16>, vector<128x128xf32> -> vector<128x128xf32>
    %7 = arith.addf %3, %6 : vector<128x128xf32>
    %c0_6 = arith.constant 0 : index
    %c0_7 = arith.constant 0 : index
    %8 = vector.load %arg11[%c0_6, %c0_7] : memref<128x128xf32, #tpu.memory_space<vmem>>, vector<128x128xf32>
    tpu.vector_store %arg11[%c0_6, %c0_7], %7 {strides = array<i32>} : memref<128x128xf32, #tpu.memory_space<vmem>>, vector<128x128xf32>,
    %c0_i32_8 = arith.constant 0 : i32
    %9 = arith.cmpi eq, %arg1, %c0_i32_8 : i32
    %10 = arith.extui %9 : i1 to i32
    %c0_i32_9 = arith.constant 0 : i32
    %11 = arith.cmpi ne, %10, %c0_i32_9 : i32
    scf.if %11 {
      %c0_10 = arith.constant 0 : index
      %c0_11 = arith.constant 0 : index
      %12 = vector.load %arg4[%c0_10, %c0_11] : memref<128x128xbf16, #tpu.memory_space<vmem>>, vector<128x128xbf16>
      %13 = arith.extf %12 : vector<128x128xbf16> to vector<128x128xf32>
      %c0_12 = arith.constant 0 : index
      %c0_13 = arith.constant 0 : index
      %14 = vector.load %arg11[%c0_12, %c0_13] : memref<128x128xf32, #tpu.memory_space<vmem>>, vector<128x128xf32>
      %15 = arith.addf %13, %14 : vector<128x128xf32>
      %16 = arith.truncf %15 : vector<128x128xf32> to vector<128x128xbf16>
      %c0_14 = arith.constant 0 : index
      %c0_15 = arith.constant 0 : index
      %17 = vector.load %arg5[%c0_14, %c0_15] : memref<128x128xbf16, #tpu.memory_space<vmem>>, vector<128x128xbf16>
      %cst_16 = arith.constant dense<0.000000e+00> : vector<128x128xf32>
      %18 = tpu.matmul %16, %17, %cst_16 {dimension_numbers = #tpu.dot_dimension_numbers<[1], [0], [0], [1], [0, 0, 1, 1], [], []>} : vector<128x128xbf16>, vector<128x128xbf16>, vector<128x128xf32> -> vector<128x128xf32>
      %c0_17 = arith.constant 0 : index
      %c0_18 = arith.constant 0 : index
      %19 = vector.load %arg6[%c0_17, %c0_18] : memref<1x128xf32, #tpu.memory_space<vmem>>, vector<1x128xf32>
      %20 = vector.broadcast %19 : vector<1x128xf32> to vector<128x128xf32>
      %21 = arith.addf %18, %20 : vector<128x128xf32>
      %cst_19 = arith.constant 0.000000e+00 : f32
      %22 = vector.broadcast %cst_19 : f32 to vector<128x128xf32>
      %23 = arith.maximumf %21, %22 : vector<128x128xf32>
      %24 = arith.truncf %23 : vector<128x128xf32> to vector<128x128xbf16>
      %c0_20 = arith.constant 0 : index
      %c0_21 = arith.constant 0 : index
      %25 = vector.load %arg7[%c0_20, %c0_21] : memref<128x128xbf16, #tpu.memory_space<vmem>>, vector<128x128xbf16>
      %cst_22 = arith.constant dense<0.000000e+00> : vector<128x128xf32>
      %26 = tpu.matmul %24, %25, %cst_22 {dimension_numbers = #tpu.dot_dimension_numbers<[1], [0], [0], [1], [0, 0, 1, 1], [], []>} : vector<128x128xbf16>, vector<128x128xbf16>, vector<128x128xf32> -> vector<128x128xf32>
      %c0_23 = arith.constant 0 : index
      %c0_24 = arith.constant 0 : index
      %27 = vector.load %arg8[%c0_23, %c0_24] : memref<1x128xf32, #tpu.memory_space<vmem>>, vector<1x128xf32>
      %28 = vector.broadcast %27 : vector<1x128xf32> to vector<128x128xf32>
      %29 = arith.addf %26, %28 : vector<128x128xf32>
      %c0_25 = arith.constant 0 : index
      %c0_26 = arith.constant 0 : index
      %30 = vector.load %arg9[%c0_25, %c0_26] : memref<128x128xbf16, #tpu.memory_space<vmem>>, vector<128x128xbf16>
      %cst_27 = arith.constant dense<0.000000e+00> : vector<128x128xf32>
      %31 = tpu.matmul %12, %30, %cst_27 {dimension_numbers = #tpu.dot_dimension_numbers<[1], [0], [0], [1], [0, 0, 1, 1], [], []>} : vector<128x128xbf16>, vector<128x128xbf16>, vector<128x128xf32> -> vector<128x128xf32>
      %32 = arith.addf %29, %31 : vector<128x128xf32>
      %c0_28 = arith.constant 0 : index
      %c0_29 = arith.constant 0 : index
      %33 = vector.load %arg10[%c0_28, %c0_29] : memref<128x128xf32, #tpu.memory_space<vmem>>, vector<128x128xf32>
      tpu.vector_store %arg10[%c0_28, %c0_29], %32 {strides = array<i32>} : memref<128x128xf32, #tpu.memory_space<vmem>>, vector<128x128xf32>,
    } else {
    }
    return
  }
  func.func @transform_0(%arg0: i32, %arg1: i32) -> (i32, i32) {
    %c0_i32 = arith.constant 0 : i32
    return %arg0, %arg1 : i32, i32
  }
  func.func @transform_1(%arg0: i32, %arg1: i32) -> (i32, i32) {
    %c0_i32 = arith.constant 0 : i32
    %c0_i32_0 = arith.constant 0 : i32
    return %arg1, %c0_i32 : i32, i32
  }
  func.func @transform_2(%arg0: i32, %arg1: i32) -> (i32, i32) {
    %c0_i32 = arith.constant 0 : i32
    %c0_i32_0 = arith.constant 0 : i32
    return %arg0, %c0_i32 : i32, i32
  }
  func.func @transform_3(%arg0: i32, %arg1: i32) -> (i32, i32) {
    %c0_i32 = arith.constant 0 : i32
    %c0_i32_0 = arith.constant 0 : i32
    %c0_i32_1 = arith.constant 0 : i32
    return %c0_i32, %c0_i32_0 : i32, i32
  }
  func.func @transform_4(%arg0: i32, %arg1: i32) -> (i32, i32) {
    %c0_i32 = arith.constant 0 : i32
    %c0_i32_0 = arith.constant 0 : i32
    %c0_i32_1 = arith.constant 0 : i32
    return %c0_i32, %c0_i32_0 : i32, i32
  }
  func.func @transform_5(%arg0: i32, %arg1: i32) -> (i32, i32) {
    %c0_i32 = arith.constant 0 : i32
    %c0_i32_0 = arith.constant 0 : i32
    %c0_i32_1 = arith.constant 0 : i32
    return %c0_i32, %c0_i32_0 : i32, i32
  }
  func.func @transform_6(%arg0: i32, %arg1: i32) -> (i32, i32) {
    %c0_i32 = arith.constant 0 : i32
    %c0_i32_0 = arith.constant 0 : i32
    %c0_i32_1 = arith.constant 0 : i32
    return %c0_i32, %c0_i32_0 : i32, i32
  }
  func.func @transform_7(%arg0: i32, %arg1: i32) -> (i32, i32) {
    %c0_i32 = arith.constant 0 : i32
    %c0_i32_0 = arith.constant 0 : i32
    %c0_i32_1 = arith.constant 0 : i32
    return %c0_i32, %c0_i32_0 : i32, i32
  }
  func.func @transform_8(%arg0: i32, %arg1: i32) -> (i32, i32) {
    %c0_i32 = arith.constant 0 : i32
    %c0_i32_0 = arith.constant 0 : i32
    return %arg0, %c0_i32 : i32, i32
  }
}

</mosaic_0001>

<llo_original>
// kernel: tpu_custom_call.1
$region0: #{tpu_custom_call.1}
  #allocation0 [shape = 'u32[]', space=smem, size = 0x4, offset = 0x4, fixed_abs, tag = 'smem constant byte address 0x4 - core index']
  #allocation1 [shape = 'u32[144,128]{1,0:T(1,128)}', space=vmem, size = 0x12000, scoped, tag = 'internal scratch']
  #allocation2 [shape = 'f32[128,128]{1,0:T(8,128)}', space=vmem, size = 0x10000, scoped, tag = 'scratch operand']
  %s0 = inlined_call_operand.hbm [shape: bf16[128,128], index: 0, kind: input, shape index: {}]
  %s1 = inlined_call_operand.hbm [shape: bf16[128,128], index: 1, kind: input, shape index: {}]
  %s2 = inlined_call_operand.hbm [shape: bf16[128,128], index: 2, kind: input, shape index: {}]
  %s3 = inlined_call_operand.hbm [shape: bf16[128,128], index: 3, kind: input, shape index: {}]
  %s4 = inlined_call_operand.vmem [shape: f32[1,128], index: 4, kind: input, shape index: {}]
  %s5 = inlined_call_operand.hbm [shape: bf16[128,128], index: 5, kind: input, shape index: {}]
  %s6 = inlined_call_operand.vmem [shape: f32[1,128], index: 6, kind: input, shape index: {}]
  %s7 = inlined_call_operand.hbm [shape: bf16[128,128], index: 7, kind: input, shape index: {}]
  %s8 = inlined_call_operand.hbm [shape: f32[128,128], index: 8, kind: output, shape index: {}]
  %s9 = sld [smem:[#allocation0]]
  $region74: #{tpu_custom_call.1} parent=0
    _
  %s11 = ssub.s32 1, %s9
  %s12 = scalar_select 0, %s11, %s9
  $region1: #{tpu_custom_call.1} parent=0
    #allocation3 [shape = 'u8[32768]{0}', space=vmem, size = 0x8000, scoped, tag = 'input window, operand 0, single buffered']
    #allocation4 [shape = 's32[1]{0}', space=sflag, size = 0x4, scoped, tag = 'scoped memory for tpu_custom_call.1']
    #allocation5 [shape = 's32[1]{0}', space=sflag, size = 0x4, scoped, tag = 'scoped memory for tpu_custom_call.1']
    #allocation6 [shape = 'u8[32768]{0}', space=vmem, size = 0x8000, scoped, tag = 'input window, operand 1, single buffered']
    #allocation7 [shape = 's32[1]{0}', space=sflag, size = 0x4, scoped, tag = 'scoped memory for tpu_custom_call.1']
    #allocation8 [shape = 'u8[32768]{0}', space=vmem, size = 0x8000, scoped, tag = 'input window, operand 2, single buffered']
    #allocation9 [shape = 'u8[32768]{0}', space=vmem, size = 0x8000, scoped, tag = 'input window, operand 3, single buffered']
    #allocation10 [shape = 's32[1]{0}', space=sflag, size = 0x4, scoped, tag = 'scoped memory for tpu_custom_call.1']
    #allocation11 [shape = 'u8[32768]{0}', space=vmem, size = 0x8000, scoped, tag = 'input window, operand 5, single buffered']
    #allocation12 [shape = 'u8[32768]{0}', space=vmem, size = 0x8000, scoped, tag = 'input window, operand 7, single buffered']
    #allocation13 [shape = 's32[1]{0}', space=sflag, size = 0x4, scoped, tag = 'scoped memory for tpu_custom_call.1']
    #allocation14 [shape = 'u8[65536]{0}', space=vmem, size = 0x10000, scoped, tag = 'output window, operand 0, single buffered']
    %13 = vsyncpa [#allocation4], 0
    %14 = vsyncpa [#allocation7], 0
    %15 = vsyncpa [#allocation10], 0
    %16 = vsyncpa [#allocation13], 0
    %17 = vsyncpa [#allocation5], 0
    // Predicated region
    $region2: #{tpu_custom_call.1} parent=1 // pred_check
      _
    $region3: #{tpu_custom_call.1} parent=1 // pred_check_branch
      %19 = sbr.rel (0) target = $region5
    $region4: #{tpu_custom_call.1} parent=1 // pred_region
      %s21 = ssub.s32 1024, 1024
      %22 = vsyncadd [#allocation4], %s21
      %s23 = sshll.u32 [#allocation3], 4
      %s24 = int_to_ptr.vmem [resolvable:$true] %s23
      %29 = dma.hbm_to_vmem [thread:$0]  %s0, 1024, %s24, [#allocation4], 64, 64, 4
    $region5: #{tpu_custom_call.1} parent=1 // pred_fallthru
      _
    // Predicated region
    $region6: #{tpu_custom_call.1} parent=1 // pred_check
      _
    $region7: #{tpu_custom_call.1} parent=1 // pred_check_branch
      %31 = sbr.rel (0) target = $region9
    $region8: #{tpu_custom_call.1} parent=1 // pred_region
      %s33 = ssub.s32 1024, 1024
      %34 = vsyncadd [#allocation7], %s33
      %s35 = sshll.u32 [#allocation6], 4
      %s36 = int_to_ptr.vmem [resolvable:$true] %s35
      %41 = dma.hbm_to_vmem [thread:$0]  %s1, 1024, %s36, [#allocation7], 64, 64, 4
    $region9: #{tpu_custom_call.1} parent=1 // pred_fallthru
      _
    // Predicated region
    $region10: #{tpu_custom_call.1} parent=1 // pred_check
      _
    $region11: #{tpu_custom_call.1} parent=1 // pred_check_branch
      %43 = sbr.rel (0) target = $region13
    $region12: #{tpu_custom_call.1} parent=1 // pred_region
      %s45 = ssub.s32 1024, 1024
      %46 = vsyncadd [#allocation7], %s45
      %s47 = sshll.u32 [#allocation8], 4
      %s48 = int_to_ptr.vmem [resolvable:$true] %s47
      %53 = dma.hbm_to_vmem [thread:$0]  %s2, 1024, %s48, [#allocation7], 64, 64, 4
    $region13: #{tpu_custom_call.1} parent=1 // pred_fallthru
      _
    // Predicated region
    $region14: #{tpu_custom_call.1} parent=1 // pred_check
      _
    $region15: #{tpu_custom_call.1} parent=1 // pred_check_branch
      %55 = sbr.rel (0) target = $region17
    $region16: #{tpu_custom_call.1} parent=1 // pred_region
      %s57 = ssub.s32 1024, 1024
      %58 = vsyncadd [#allocation10], %s57
      %s59 = sshll.u32 [#allocation9], 4
      %s60 = int_to_ptr.vmem [resolvable:$true] %s59
      %65 = dma.hbm_to_vmem [thread:$0]  %s3, 1024, %s60, [#allocation10], 64, 64, 4
    $region17: #{tpu_custom_call.1} parent=1 // pred_fallthru
      _
    // Predicated region
    $region18: #{tpu_custom_call.1} parent=1 // pred_check
      _
    $region19: #{tpu_custom_call.1} parent=1 // pred_check_branch
      %67 = sbr.rel (0) target = $region21
    $region20: #{tpu_custom_call.1} parent=1 // pred_region
      _
    $region21: #{tpu_custom_call.1} parent=1 // pred_fallthru
      _
    // Predicated region
    $region22: #{tpu_custom_call.1} parent=1 // pred_check
      _
    $region23: #{tpu_custom_call.1} parent=1 // pred_check_branch
      %69 = sbr.rel (0) target = $region25
    $region24: #{tpu_custom_call.1} parent=1 // pred_region
      %s71 = ssub.s32 1024, 1024
      %72 = vsyncadd [#allocation10], %s71
      %s73 = sshll.u32 [#allocation11], 4
      %s74 = int_to_ptr.vmem [resolvable:$true] %s73
      %79 = dma.hbm_to_vmem [thread:$0]  %s5, 1024, %s74, [#allocation10], 64, 64, 4
    $region25: #{tpu_custom_call.1} parent=1 // pred_fallthru
      _
    // Predicated region
    $region26: #{tpu_custom_call.1} parent=1 // pred_check
      _
    $region27: #{tpu_custom_call.1} parent=1 // pred_check_branch
      %81 = sbr.rel (0) target = $region29
    $region28: #{tpu_custom_call.1} parent=1 // pred_region
      _
    $region29: #{tpu_custom_call.1} parent=1 // pred_fallthru
      _
    // Predicated region
    $region30: #{tpu_custom_call.1} parent=1 // pred_check
      _
    $region31: #{tpu_custom_call.1} parent=1 // pred_check_branch
      %83 = sbr.rel (0) target = $region33
    $region32: #{tpu_custom_call.1} parent=1 // pred_region
      %s85 = ssub.s32 1024, 1024
      %86 = vsyncadd [#allocation13], %s85
      %s87 = sshll.u32 [#allocation12], 4
      %s88 = int_to_ptr.vmem [resolvable:$true] %s87
      %93 = dma.hbm_to_vmem [thread:$0]  %s7, 1024, %s88, [#allocation13], 64, 64, 4
    $region33: #{tpu_custom_call.1} parent=1 // pred_fallthru
      _
    // Predicated region
    $region34: #{tpu_custom_call.1} parent=1 // pred_check
      _
    $region35: #{tpu_custom_call.1} parent=1 // pred_check_branch
      %95 = sbr.rel (0) target = $region37
    $region36: #{tpu_custom_call.1} parent=1 // pred_region
      %96 = dma.done [#allocation4], 1024
    $region37: #{tpu_custom_call.1} parent=1 // pred_fallthru
      _
    // Predicated region
    $region38: #{tpu_custom_call.1} parent=1 // pred_check
      _
    $region39: #{tpu_custom_call.1} parent=1 // pred_check_branch
      %98 = sbr.rel (0) target = $region41
    $region40: #{tpu_custom_call.1} parent=1 // pred_region
      %99 = dma.done [#allocation7], 1024
    $region41: #{tpu_custom_call.1} parent=1 // pred_fallthru
      _
    // Predicated region
    $region42: #{tpu_custom_call.1} parent=1 // pred_check
      _
    $region43: #{tpu_custom_call.1} parent=1 // pred_check_branch
      %101 = sbr.rel (0) target = $region45
    $region44: #{tpu_custom_call.1} parent=1 // pred_region
      %102 = dma.done [#allocation7], 1024
    $region45: #{tpu_custom_call.1} parent=1 // pred_fallthru
      _
    // Predicated region
    $region46: #{tpu_custom_call.1} parent=1 // pred_check
      _
    $region47: #{tpu_custom_call.1} parent=1 // pred_check_branch
      %104 = sbr.rel (0) target = $region49
    $region48: #{tpu_custom_call.1} parent=1 // pred_region
      %105 = dma.done [#allocation10], 1024
    $region49: #{tpu_custom_call.1} parent=1 // pred_fallthru
      _
    // Predicated region
    $region50: #{tpu_custom_call.1} parent=1 // pred_check
      _
    $region51: #{tpu_custom_call.1} parent=1 // pred_check_branch
      %107 = sbr.rel (0) target = $region53
    $region52: #{tpu_custom_call.1} parent=1 // pred_region
      %108 = dma.done [#allocation10], 1024
    $region53: #{tpu_custom_call.1} parent=1 // pred_fallthru
      _
    // Predicated region
    $region54: #{tpu_custom_call.1} parent=1 // pred_check
      _
    $region55: #{tpu_custom_call.1} parent=1 // pred_check_branch
      %110 = sbr.rel (0) target = $region57
    $region56: #{tpu_custom_call.1} parent=1 // pred_region
      %111 = dma.done [#allocation13], 1024
    $region57: #{tpu_custom_call.1} parent=1 // pred_fallthru
      _
    %p113 = scmp.eq.s32.totalorder 0, 0
    // Predicated region
    $region58: #{tpu_custom_call.1} parent=1 // pred_check
      %p114 = pneg %p113
    $region59: #{tpu_custom_call.1} parent=1 // pred_check_branch
      %116 = sbr.rel (%p114) target = $region61
    $region60: #{tpu_custom_call.1} parent=1 // pred_region
      %117 = vst [vmem:[#allocation2] sm:$0xff] 0.0
      %118 = vst [vmem:[#allocation2 + $0x8] sm:$0xff] 0.0
      %119 = vst [vmem:[#allocation2 + $0x10] sm:$0xff] 0.0
      %120 = vst [vmem:[#allocation2 + $0x18] sm:$0xff] 0.0
      %121 = vst [vmem:[#allocation2 + $0x20] sm:$0xff] 0.0
      %122 = vst [vmem:[#allocation2 + $0x28] sm:$0xff] 0.0
      %123 = vst [vmem:[#allocation2 + $0x30] sm:$0xff] 0.0
      %124 = vst [vmem:[#allocation2 + $0x38] sm:$0xff] 0.0
      %125 = vst [vmem:[#allocation2 + $0x40] sm:$0xff] 0.0
      %126 = vst [vmem:[#allocation2 + $0x48] sm:$0xff] 0.0
      %127 = vst [vmem:[#allocation2 + $0x50] sm:$0xff] 0.0
      %128 = vst [vmem:[#allocation2 + $0x58] sm:$0xff] 0.0
      %129 = vst [vmem:[#allocation2 + $0x60] sm:$0xff] 0.0
      %130 = vst [vmem:[#allocation2 + $0x68] sm:$0xff] 0.0
      %131 = vst [vmem:[#allocation2 + $0x70] sm:$0xff] 0.0
      %132 = vst [vmem:[#allocation2 + $0x78] sm:$0xff] 0.0
    $region61: #{tpu_custom_call.1} parent=1 // pred_fallthru
      _
    %v133 = vld [vmem:[#allocation2] sm:$0xff]
    %v134 = vld [vmem:[#allocation2 + $0x8] sm:$0xff]
    %v135 = vld [vmem:[#allocation2 + $0x10] sm:$0xff]
    %v136 = vld [vmem:[#allocation2 + $0x18] sm:$0xff]
    %v137 = vld [vmem:[#allocation2 + $0x20] sm:$0xff]
    %v138 = vld [vmem:[#allocation2 + $0x28] sm:$0xff]
    %v139 = vld [vmem:[#allocation2 + $0x30] sm:$0xff]
    %v140 = vld [vmem:[#allocation2 + $0x38] sm:$0xff]
    %v141 = vld [vmem:[#allocation2 + $0x40] sm:$0xff]
    %v142 = vld [vmem:[#allocation2 + $0x48] sm:$0xff]
    %v143 = vld [vmem:[#allocation2 + $0x50] sm:$0xff]
    %v144 = vld [vmem:[#allocation2 + $0x58] sm:$0xff]
    %v145 = vld [vmem:[#allocation2 + $0x60] sm:$0xff]
    %v146 = vld [vmem:[#allocation2 + $0x68] sm:$0xff]
    %v147 = vld [vmem:[#allocation2 + $0x70] sm:$0xff]
    %v148 = vld [vmem:[#allocation2 + $0x78] sm:$0xff]
    %v149 = vld [vmem:[#allocation3] sm:$0xf]
    %v150 = vld [vmem:[#allocation3 + $0x4] sm:$0xf]
    %v151 = vld [vmem:[#allocation3 + $0x8] sm:$0xf]
    %v152 = vld [vmem:[#allocation3 + $0xc] sm:$0xf]
    %v153 = vld [vmem:[#allocation3 + $0x10] sm:$0xf]
    %v154 = vld [vmem:[#allocation3 + $0x14] sm:$0xf]
    %v155 = vld [vmem:[#allocation3 + $0x18] sm:$0xf]
    %v156 = vld [vmem:[#allocation3 + $0x1c] sm:$0xf]
    %v157 = vld [vmem:[#allocation3 + $0x20] sm:$0xf]
    %v158 = vld [vmem:[#allocation3 + $0x24] sm:$0xf]
    %v159 = vld [vmem:[#allocation3 + $0x28] sm:$0xf]
    %v160 = vld [vmem:[#allocation3 + $0x2c] sm:$0xf]
    %v161 = vld [vmem:[#allocation3 + $0x30] sm:$0xf]
    %v162 = vld [vmem:[#allocation3 + $0x34] sm:$0xf]
    %v163 = vld [vmem:[#allocation3 + $0x38] sm:$0xf]
    %v164 = vld [vmem:[#allocation3 + $0x3c] sm:$0xf]
    %v165 = vld [vmem:[#allocation6] sm:$0xf]
    %v166 = vld [vmem:[#allocation6 + $0x4] sm:$0xf]
    %v167 = vld [vmem:[#allocation6 + $0x8] sm:$0xf]
    %v168 = vld [vmem:[#allocation6 + $0xc] sm:$0xf]
    %v169 = vld [vmem:[#allocation6 + $0x10] sm:$0xf]
    %v170 = vld [vmem:[#allocation6 + $0x14] sm:$0xf]
    %v171 = vld [vmem:[#allocation6 + $0x18] sm:$0xf]
    %v172 = vld [vmem:[#allocation6 + $0x1c] sm:$0xf]
    %v173 = vld [vmem:[#allocation6 + $0x20] sm:$0xf]
    %v174 = vld [vmem:[#allocation6 + $0x24] sm:$0xf]
    %v175 = vld [vmem:[#allocation6 + $0x28] sm:$0xf]
    %v176 = vld [vmem:[#allocation6 + $0x2c] sm:$0xf]
    %v177 = vld [vmem:[#allocation6 + $0x30] sm:$0xf]
    %v178 = vld [vmem:[#allocation6 + $0x34] sm:$0xf]
    %v179 = vld [vmem:[#allocation6 + $0x38] sm:$0xf]
    %v180 = vld [vmem:[#allocation6 + $0x3c] sm:$0xf]
    %v197 = vunpack.c.l.b16 %v149
    %v198 = vunpack.c.l.b16 %v150
    %v199 = vunpack.c.l.b16 %v151
    %v200 = vunpack.c.l.b16 %v152
    %v201 = vunpack.c.l.b16 %v153
    %v202 = vunpack.c.l.b16 %v154
    %v203 = vunpack.c.l.b16 %v155
    %v204 = vunpack.c.l.b16 %v156
    %v205 = vunpack.c.l.b16 %v157
    %v206 = vunpack.c.l.b16 %v158
    %v207 = vunpack.c.l.b16 %v159
    %v208 = vunpack.c.l.b16 %v160
    %v209 = vunpack.c.l.b16 %v161
    %v210 = vunpack.c.l.b16 %v162
    %v211 = vunpack.c.l.b16 %v163
    %v212 = vunpack.c.l.b16 %v164
    %v213 = vpack.c.b16 %v198, %v197
    %v214 = vpack.c.b16 %v200, %v199
    %v215 = vpack.c.b16 %v202, %v201
    %v216 = vpack.c.b16 %v204, %v203
    %v217 = vpack.c.b16 %v206, %v205
    %v218 = vpack.c.b16 %v208, %v207
    %v219 = vpack.c.b16 %v210, %v209
    %v220 = vpack.c.b16 %v212, %v211
    %v245 = vunpack.c.l.b16 %v165
    %v246 = vunpack.c.l.b16 %v166
    %v247 = vunpack.c.l.b16 %v167
    %v248 = vunpack.c.l.b16 %v168
    %v249 = vunpack.c.l.b16 %v169
    %v250 = vunpack.c.l.b16 %v170
    %v251 = vunpack.c.l.b16 %v171
    %v252 = vunpack.c.l.b16 %v172
    %v253 = vunpack.c.l.b16 %v173
    %v254 = vunpack.c.l.b16 %v174
    %v255 = vunpack.c.l.b16 %v175
    %v256 = vunpack.c.l.b16 %v176
    %v257 = vunpack.c.l.b16 %v177
    %v258 = vunpack.c.l.b16 %v178
    %v259 = vunpack.c.l.b16 %v179
    %v260 = vunpack.c.l.b16 %v180
    %v261 = vpack.c.b16 %v246, %v245
    %v262 = vpack.c.b16 %v248, %v247
    %v263 = vpack.c.b16 %v250, %v249
    %v264 = vpack.c.b16 %v252, %v251
    %v265 = vpack.c.b16 %v254, %v253
    %v266 = vpack.c.b16 %v256, %v255
    %v267 = vpack.c.b16 %v258, %v257
    %v268 = vpack.c.b16 %v260, %v259
    %277 = vmatprep.subr.bf16.mxu0 0
    %278 = vmatpush1.bf16.msra.mxu0 %v268
    %279 = vmatprep.subr.bf16.mxu0 0
    %280 = vmatpush1.bf16.msra.mxu0 %v267
    %281 = vmatprep.subr.bf16.mxu0 0
    %282 = vmatpush1.bf16.msra.mxu0 %v266
    %283 = vmatprep.subr.bf16.mxu0 0
    %284 = vmatpush1.bf16.msra.mxu0 %v265
    %285 = vmatprep.subr.bf16.mxu0 0
    %286 = vmatpush1.bf16.msra.mxu0 %v264
    %287 = vmatprep.subr.bf16.mxu0 0
    %288 = vmatpush1.bf16.msra.mxu0 %v263
    %289 = vmatprep.subr.bf16.mxu0 0
    %290 = vmatpush1.bf16.msra.mxu0 %v262
    %291 = vmatprep.subr.bf16.mxu0 0
    %292 = vmatpush1.bf16.msra.mxu0 %v261
    %293 = vmatprep.subr.bf16.mxu0 0
    %294 = vmatpush2.bf16.msra.mxu0 0
    %295 = vmatprep.subr.bf16.mxu0 0
    %296 = vmatpush2.bf16.msra.mxu0 0
    %297 = vmatprep.subr.bf16.mxu0 0
    %298 = vmatpush2.bf16.msra.mxu0 0
    %299 = vmatprep.subr.bf16.mxu0 0
    %300 = vmatpush2.bf16.msra.mxu0 0
    %301 = vmatprep.subr.bf16.mxu0 0
    %302 = vmatpush2.bf16.msra.mxu0 0
    %303 = vmatprep.subr.bf16.mxu0 0
    %304 = vmatpush2.bf16.msra.mxu0 0
    %305 = vmatprep.subr.bf16.mxu0 0
    %306 = vmatpush2.bf16.msra.mxu0 0
    %307 = vmatprep.subr.bf16.mxu0 0
    %308 = vmatpush2.bf16.msra.mxu0 0
    %309 = vmatprep.mubr.bf16.mxu0 0
    %310 = vmatmul.mubr.bf16.gmra.mxu0 %v213
    %v311 = vpop.f32.mrf.mxu0
    %v312 = vadd.f32 0.0, %v311
    %v313 = vpop.f32.mrf.mxu0
    %v314 = vpop.f32.mrf.mxu0
    %v315 = vadd.f32 0.0, %v314
    %v316 = vpop.f32.mrf.mxu0
    %317 = vmatprep.mubr.bf16.mxu0 0
    %318 = vmatmul.mubr.bf16.gmra.mxu0 %v214
    %v319 = vpop.f32.mrf.mxu0
    %v320 = vadd.f32 0.0, %v319
    %v321 = vpop.f32.mrf.mxu0
    %v322 = vpop.f32.mrf.mxu0
    %v323 = vadd.f32 0.0, %v322
    %v324 = vpop.f32.mrf.mxu0
    %325 = vmatprep.mubr.bf16.mxu0 0
    %326 = vmatmul.mubr.bf16.gmra.mxu0 %v215
    %v327 = vpop.f32.mrf.mxu0
    %v328 = vadd.f32 0.0, %v327
    %v329 = vpop.f32.mrf.mxu0
    %v330 = vpop.f32.mrf.mxu0
    %v331 = vadd.f32 0.0, %v330
    %v332 = vpop.f32.mrf.mxu0
    %333 = vmatprep.mubr.bf16.mxu0 0
    %334 = vmatmul.mubr.bf16.gmra.mxu0 %v216
    %v335 = vpop.f32.mrf.mxu0
    %v336 = vadd.f32 0.0, %v335
    %v337 = vpop.f32.mrf.mxu0
    %v338 = vpop.f32.mrf.mxu0
    %v339 = vadd.f32 0.0, %v338
    %v340 = vpop.f32.mrf.mxu0
    %341 = vmatprep.mubr.bf16.mxu0 0
    %342 = vmatmul.mubr.bf16.gmra.mxu0 %v217
    %v343 = vpop.f32.mrf.mxu0
    %v344 = vadd.f32 0.0, %v343
    %v345 = vpop.f32.mrf.mxu0
    %v346 = vpop.f32.mrf.mxu0
    %v347 = vadd.f32 0.0, %v346
    %v348 = vpop.f32.mrf.mxu0
    %349 = vmatprep.mubr.bf16.mxu0 0
    %350 = vmatmul.mubr.bf16.gmra.mxu0 %v218
    %v351 = vpop.f32.mrf.mxu0
    %v352 = vadd.f32 0.0, %v351
    %v353 = vpop.f32.mrf.mxu0
    %v354 = vpop.f32.mrf.mxu0
    %v355 = vadd.f32 0.0, %v354
    %v356 = vpop.f32.mrf.mxu0
    %357 = vmatprep.mubr.bf16.mxu0 0
    %358 = vmatmul.mubr.bf16.gmra.mxu0 %v219
    %v359 = vpop.f32.mrf.mxu0
    %v360 = vadd.f32 0.0, %v359
    %v361 = vpop.f32.mrf.mxu0
    %v362 = vpop.f32.mrf.mxu0
    %v363 = vadd.f32 0.0, %v362
    %v364 = vpop.f32.mrf.mxu0
    %365 = vmatprep.mubr.bf16.mxu0 0
    %366 = vmatmul.mubr.bf16.gmra.mxu0 %v220
    %v367 = vpop.f32.mrf.mxu0
    %v368 = vadd.f32 0.0, %v367
    %v369 = vpop.f32.mrf.mxu0
    %v370 = vpop.f32.mrf.mxu0
    %v371 = vadd.f32 0.0, %v370
    %v372 = vpop.f32.mrf.mxu0
    %373 = vdwg.mxu0
    %v374 = vadd.f32 %v133, %v312
    %v375 = vadd.f32 %v134, %v315
    %v376 = vadd.f32 %v135, %v320
    %v377 = vadd.f32 %v136, %v323
    %v378 = vadd.f32 %v137, %v328
    %v379 = vadd.f32 %v138, %v331
    %v380 = vadd.f32 %v139, %v336
    %v381 = vadd.f32 %v140, %v339
    %v382 = vadd.f32 %v141, %v344
    %v383 = vadd.f32 %v142, %v347
    %v384 = vadd.f32 %v143, %v352
    %v385 = vadd.f32 %v144, %v355
    %v386 = vadd.f32 %v145, %v360
    %v387 = vadd.f32 %v146, %v363
    %v388 = vadd.f32 %v147, %v368
    %v389 = vadd.f32 %v148, %v371
    %390 = vst [vmem:[#allocation2] sm:$0xff] %v374
    %391 = vst [vmem:[#allocation2 + $0x8] sm:$0xff] %v375
    %392 = vst [vmem:[#allocation2 + $0x10] sm:$0xff] %v376
    %393 = vst [vmem:[#allocation2 + $0x18] sm:$0xff] %v377
    %394 = vst [vmem:[#allocation2 + $0x20] sm:$0xff] %v378
    %395 = vst [vmem:[#allocation2 + $0x28] sm:$0xff] %v379
    %396 = vst [vmem:[#allocation2 + $0x30] sm:$0xff] %v380
    %397 = vst [vmem:[#allocation2 + $0x38] sm:$0xff] %v381
    %398 = vst [vmem:[#allocation2 + $0x40] sm:$0xff] %v382
    %399 = vst [vmem:[#allocation2 + $0x48] sm:$0xff] %v383
    %400 = vst [vmem:[#allocation2 + $0x50] sm:$0xff] %v384
    %401 = vst [vmem:[#allocation2 + $0x58] sm:$0xff] %v385
    %402 = vst [vmem:[#allocation2 + $0x60] sm:$0xff] %v386
    %403 = vst [vmem:[#allocation2 + $0x68] sm:$0xff] %v387
    %404 = vst [vmem:[#allocation2 + $0x70] sm:$0xff] %v388
    %405 = vst [vmem:[#allocation2 + $0x78] sm:$0xff] %v389
    // Predicated region
    $region62: #{tpu_custom_call.1} parent=1 // pred_check
      %p406 = pneg %p113
    $region63: #{tpu_custom_call.1} parent=1 // pred_check_branch
      %408 = sbr.rel (%p406) target = $region65
    $region64: #{tpu_custom_call.1} parent=1 // pred_region
      %v409 = vld [vmem:[#allocation8] sm:$0xf]
      %v410 = vld [vmem:[#allocation8 + $0x4] sm:$0xf]
      %v411 = vld [vmem:[#allocation8 + $0x8] sm:$0xf]
      %v412 = vld [vmem:[#allocation8 + $0xc] sm:$0xf]
      %v413 = vld [vmem:[#allocation8 + $0x10] sm:$0xf]
      %v414 = vld [vmem:[#allocation8 + $0x14] sm:$0xf]
      %v415 = vld [vmem:[#allocation8 + $0x18] sm:$0xf]
      %v416 = vld [vmem:[#allocation8 + $0x1c] sm:$0xf]
      %v417 = vld [vmem:[#allocation8 + $0x20] sm:$0xf]
      %v418 = vld [vmem:[#allocation8 + $0x24] sm:$0xf]
      %v419 = vld [vmem:[#allocation8 + $0x28] sm:$0xf]
      %v420 = vld [vmem:[#allocation8 + $0x2c] sm:$0xf]
      %v421 = vld [vmem:[#allocation8 + $0x30] sm:$0xf]
      %v422 = vld [vmem:[#allocation8 + $0x34] sm:$0xf]
      %v423 = vld [vmem:[#allocation8 + $0x38] sm:$0xf]
      %v424 = vld [vmem:[#allocation8 + $0x3c] sm:$0xf]
      %v425 = vunpack.c.l.bf16 %v409
      %v426 = vunpack.c.l.bf16 %v410
      %v427 = vunpack.c.l.bf16 %v411
      %v428 = vunpack.c.l.bf16 %v412
      %v429 = vunpack.c.l.bf16 %v413
      %v430 = vunpack.c.l.bf16 %v414
      %v431 = vunpack.c.l.bf16 %v415
      %v432 = vunpack.c.l.bf16 %v416
      %v433 = vunpack.c.l.bf16 %v417
      %v434 = vunpack.c.l.bf16 %v418
      %v435 = vunpack.c.l.bf16 %v419
      %v436 = vunpack.c.l.bf16 %v420
      %v437 = vunpack.c.l.bf16 %v421
      %v438 = vunpack.c.l.bf16 %v422
      %v439 = vunpack.c.l.bf16 %v423
      %v440 = vunpack.c.l.bf16 %v424
      %v441 = vld [vmem:[#allocation2] sm:$0xff]
      %v442 = vld [vmem:[#allocation2 + $0x8] sm:$0xff]
      %v443 = vld [vmem:[#allocation2 + $0x10] sm:$0xff]
      %v444 = vld [vmem:[#allocation2 + $0x18] sm:$0xff]
      %v445 = vld [vmem:[#allocation2 + $0x20] sm:$0xff]
      %v446 = vld [vmem:[#allocation2 + $0x28] sm:$0xff]
      %v447 = vld [vmem:[#allocation2 + $0x30] sm:$0xff]
      %v448 = vld [vmem:[#allocation2 + $0x38] sm:$0xff]
      %v449 = vld [vmem:[#allocation2 + $0x40] sm:$0xff]
      %v450 = vld [vmem:[#allocation2 + $0x48] sm:$0xff]
      %v451 = vld [vmem:[#allocation2 + $0x50] sm:$0xff]
      %v452 = vld [vmem:[#allocation2 + $0x58] sm:$0xff]
      %v453 = vld [vmem:[#allocation2 + $0x60] sm:$0xff]
      %v454 = vld [vmem:[#allocation2 + $0x68] sm:$0xff]
      %v455 = vld [vmem:[#allocation2 + $0x70] sm:$0xff]
      %v456 = vld [vmem:[#allocation2 + $0x78] sm:$0xff]
      %v457 = vadd.f32 %v425, %v441
      %v458 = vadd.f32 %v426, %v442
      %v459 = vadd.f32 %v427, %v443
      %v460 = vadd.f32 %v428, %v444
      %v461 = vadd.f32 %v429, %v445
      %v462 = vadd.f32 %v430, %v446
      %v463 = vadd.f32 %v431, %v447
      %v464 = vadd.f32 %v432, %v448
      %v465 = vadd.f32 %v433, %v449
      %v466 = vadd.f32 %v434, %v450
      %v467 = vadd.f32 %v435, %v451
      %v468 = vadd.f32 %v436, %v452
      %v469 = vadd.f32 %v437, %v453
      %v470 = vadd.f32 %v438, %v454
      %v471 = vadd.f32 %v439, %v455
      %v472 = vadd.f32 %v440, %v456
      %v473 = vpack.c.bf16 %v458, %v457
      %v474 = vpack.c.bf16 %v460, %v459
      %v475 = vpack.c.bf16 %v462, %v461
      %v476 = vpack.c.bf16 %v464, %v463
      %v477 = vpack.c.bf16 %v466, %v465
      %v478 = vpack.c.bf16 %v468, %v467
      %v479 = vpack.c.bf16 %v470, %v469
      %v480 = vpack.c.bf16 %v472, %v471
      %v481 = vld [vmem:[#allocation9] sm:$0xf]
      %v482 = vld [vmem:[#allocation9 + $0x4] sm:$0xf]
      %v483 = vld [vmem:[#allocation9 + $0x8] sm:$0xf]
      %v484 = vld [vmem:[#allocation9 + $0xc] sm:$0xf]
      %v485 = vld [vmem:[#allocation9 + $0x10] sm:$0xf]
      %v486 = vld [vmem:[#allocation9 + $0x14] sm:$0xf]
      %v487 = vld [vmem:[#allocation9 + $0x18] sm:$0xf]
      %v488 = vld [vmem:[#allocation9 + $0x1c] sm:$0xf]
      %v489 = vld [vmem:[#allocation9 + $0x20] sm:$0xf]
      %v490 = vld [vmem:[#allocation9 + $0x24] sm:$0xf]
      %v491 = vld [vmem:[#allocation9 + $0x28] sm:$0xf]
      %v492 = vld [vmem:[#allocation9 + $0x2c] sm:$0xf]
      %v493 = vld [vmem:[#allocation9 + $0x30] sm:$0xf]
      %v494 = vld [vmem:[#allocation9 + $0x34] sm:$0xf]
      %v495 = vld [vmem:[#allocation9 + $0x38] sm:$0xf]
      %v496 = vld [vmem:[#allocation9 + $0x3c] sm:$0xf]
      %v497 = vld [vmem:[%s4] sm:$0x1]
      %v499 = vlaneseq
      %v500 = vshrl.u32 %v499, 7
      %v501 = vsub.s32 0, %v500
      %v502 = vrot.slane %v497, %v501
      %v520 = vunpack.c.l.b16 %v481
      %v521 = vunpack.c.l.b16 %v482
      %v522 = vunpack.c.l.b16 %v483
      %v523 = vunpack.c.l.b16 %v484
      %v524 = vunpack.c.l.b16 %v485
      %v525 = vunpack.c.l.b16 %v486
      %v526 = vunpack.c.l.b16 %v487
      %v527 = vunpack.c.l.b16 %v488
      %v528 = vunpack.c.l.b16 %v489
      %v529 = vunpack.c.l.b16 %v490
      %v530 = vunpack.c.l.b16 %v491
      %v531 = vunpack.c.l.b16 %v492
      %v532 = vunpack.c.l.b16 %v493
      %v533 = vunpack.c.l.b16 %v494
      %v534 = vunpack.c.l.b16 %v495
      %v535 = vunpack.c.l.b16 %v496
      %v536 = vpack.c.b16 %v521, %v520
      %v537 = vpack.c.b16 %v523, %v522
      %v538 = vpack.c.b16 %v525, %v524
      %v539 = vpack.c.b16 %v527, %v526
      %v540 = vpack.c.b16 %v529, %v528
      %v541 = vpack.c.b16 %v531, %v530
      %v542 = vpack.c.b16 %v533, %v532
      %v543 = vpack.c.b16 %v535, %v534
      %552 = vmatprep.subr.bf16.mxu0 0
      %553 = vmatpush1.bf16.msra.mxu0 %v543
      %554 = vmatprep.subr.bf16.mxu0 0
      %555 = vmatpush1.bf16.msra.mxu0 %v542
      %556 = vmatprep.subr.bf16.mxu0 0
      %557 = vmatpush1.bf16.msra.mxu0 %v541
      %558 = vmatprep.subr.bf16.mxu0 0
      %559 = vmatpush1.bf16.msra.mxu0 %v540
      %560 = vmatprep.subr.bf16.mxu0 0
      %561 = vmatpush1.bf16.msra.mxu0 %v539
      %562 = vmatprep.subr.bf16.mxu0 0
      %563 = vmatpush1.bf16.msra.mxu0 %v538
      %564 = vmatprep.subr.bf16.mxu0 0
      %565 = vmatpush1.bf16.msra.mxu0 %v537
      %566 = vmatprep.subr.bf16.mxu0 0
      %567 = vmatpush1.bf16.msra.mxu0 %v536
      %568 = vmatprep.subr.bf16.mxu0 0
      %569 = vmatpush2.bf16.msra.mxu0 0
      %570 = vmatprep.subr.bf16.mxu0 0
      %571 = vmatpush2.bf16.msra.mxu0 0
      %572 = vmatprep.subr.bf16.mxu0 0
      %573 = vmatpush2.bf16.msra.mxu0 0
      %574 = vmatprep.subr.bf16.mxu0 0
      %575 = vmatpush2.bf16.msra.mxu0 0
      %576 = vmatprep.subr.bf16.mxu0 0
      %577 = vmatpush2.bf16.msra.mxu0 0
      %578 = vmatprep.subr.bf16.mxu0 0
      %579 = vmatpush2.bf16.msra.mxu0 0
      %580 = vmatprep.subr.bf16.mxu0 0
      %581 = vmatpush2.bf16.msra.mxu0 0
      %582 = vmatprep.subr.bf16.mxu0 0
      %583 = vmatpush2.bf16.msra.mxu0 0
      %584 = vmatprep.mubr.bf16.mxu0 0
      %585 = vmatmul.mubr.bf16.gmra.mxu0 %v473
      %v586 = vpop.f32.mrf.mxu0
      %v587 = vadd.f32 %v502, %v586
      %v588 = vpop.f32.mrf.mxu0
      %v589 = vpop.f32.mrf.mxu0
      %v590 = vadd.f32 %v502, %v589
      %v591 = vpop.f32.mrf.mxu0
      %592 = vmatprep.mubr.bf16.mxu0 0
      %593 = vmatmul.mubr.bf16.gmra.mxu0 %v474
      %v594 = vpop.f32.mrf.mxu0
      %v595 = vadd.f32 %v502, %v594
      %v596 = vpop.f32.mrf.mxu0
      %v597 = vpop.f32.mrf.mxu0
      %v598 = vadd.f32 %v502, %v597
      %v599 = vpop.f32.mrf.mxu0
      %600 = vmatprep.mubr.bf16.mxu0 0
      %601 = vmatmul.mubr.bf16.gmra.mxu0 %v475
      %v602 = vpop.f32.mrf.mxu0
      %v603 = vadd.f32 %v502, %v602
      %v604 = vpop.f32.mrf.mxu0
      %v605 = vpop.f32.mrf.mxu0
      %v606 = vadd.f32 %v502, %v605
      %v607 = vpop.f32.mrf.mxu0
      %608 = vmatprep.mubr.bf16.mxu0 0
      %609 = vmatmul.mubr.bf16.gmra.mxu0 %v476
      %v610 = vpop.f32.mrf.mxu0
      %v611 = vadd.f32 %v502, %v610
      %v612 = vpop.f32.mrf.mxu0
      %v613 = vpop.f32.mrf.mxu0
      %v614 = vadd.f32 %v502, %v613
      %v615 = vpop.f32.mrf.mxu0
      %616 = vmatprep.mubr.bf16.mxu0 0
      %617 = vmatmul.mubr.bf16.gmra.mxu0 %v477
      %v618 = vpop.f32.mrf.mxu0
      %v619 = vadd.f32 %v502, %v618
      %v620 = vpop.f32.mrf.mxu0
      %v621 = vpop.f32.mrf.mxu0
      %v622 = vadd.f32 %v502, %v621
      %v623 = vpop.f32.mrf.mxu0
      %624 = vmatprep.mubr.bf16.mxu0 0
      %625 = vmatmul.mubr.bf16.gmra.mxu0 %v478
      %v626 = vpop.f32.mrf.mxu0
      %v627 = vadd.f32 %v502, %v626
      %v628 = vpop.f32.mrf.mxu0
      %v629 = vpop.f32.mrf.mxu0
      %v630 = vadd.f32 %v502, %v629
      %v631 = vpop.f32.mrf.mxu0
      %632 = vmatprep.mubr.bf16.mxu0 0
      %633 = vmatmul.mubr.bf16.gmra.mxu0 %v479
      %v634 = vpop.f32.mrf.mxu0
      %v635 = vadd.f32 %v502, %v634
      %v636 = vpop.f32.mrf.mxu0
      %v637 = vpop.f32.mrf.mxu0
      %v638 = vadd.f32 %v502, %v637
      %v639 = vpop.f32.mrf.mxu0
      %640 = vmatprep.mubr.bf16.mxu0 0
      %641 = vmatmul.mubr.bf16.gmra.mxu0 %v480
      %v642 = vpop.f32.mrf.mxu0
      %v643 = vadd.f32 %v502, %v642
      %v644 = vpop.f32.mrf.mxu0
      %v645 = vpop.f32.mrf.mxu0
      %v646 = vadd.f32 %v502, %v645
      %v647 = vpop.f32.mrf.mxu0
      %648 = vdwg.mxu0
      %v649 = vmax.f32 %v587, 0.0
      %v650 = vmax.f32 %v590, 0.0
      %v651 = vmax.f32 %v595, 0.0
      %v652 = vmax.f32 %v598, 0.0
      %v653 = vmax.f32 %v603, 0.0
      %v654 = vmax.f32 %v606, 0.0
      %v655 = vmax.f32 %v611, 0.0
      %v656 = vmax.f32 %v614, 0.0
      %v657 = vmax.f32 %v619, 0.0
      %v658 = vmax.f32 %v622, 0.0
      %v659 = vmax.f32 %v627, 0.0
      %v660 = vmax.f32 %v630, 0.0
      %v661 = vmax.f32 %v635, 0.0
      %v662 = vmax.f32 %v638, 0.0
      %v663 = vmax.f32 %v643, 0.0
      %v664 = vmax.f32 %v646, 0.0
      %v665 = vpack.c.bf16 %v650, %v649
      %v666 = vpack.c.bf16 %v652, %v651
      %v667 = vpack.c.bf16 %v654, %v653
      %v668 = vpack.c.bf16 %v656, %v655
      %v669 = vpack.c.bf16 %v658, %v657
      %v670 = vpack.c.bf16 %v660, %v659
      %v671 = vpack.c.bf16 %v662, %v661
      %v672 = vpack.c.bf16 %v664, %v663
      %v673 = vld [vmem:[#allocation11] sm:$0xf]
      %v674 = vld [vmem:[#allocation11 + $0x4] sm:$0xf]
      %v675 = vld [vmem:[#allocation11 + $0x8] sm:$0xf]
      %v676 = vld [vmem:[#allocation11 + $0xc] sm:$0xf]
      %v677 = vld [vmem:[#allocation11 + $0x10] sm:$0xf]
      %v678 = vld [vmem:[#allocation11 + $0x14] sm:$0xf]
      %v679 = vld [vmem:[#allocation11 + $0x18] sm:$0xf]
      %v680 = vld [vmem:[#allocation11 + $0x1c] sm:$0xf]
      %v681 = vld [vmem:[#allocation11 + $0x20] sm:$0xf]
      %v682 = vld [vmem:[#allocation11 + $0x24] sm:$0xf]
      %v683 = vld [vmem:[#allocation11 + $0x28] sm:$0xf]
      %v684 = vld [vmem:[#allocation11 + $0x2c] sm:$0xf]
      %v685 = vld [vmem:[#allocation11 + $0x30] sm:$0xf]
      %v686 = vld [vmem:[#allocation11 + $0x34] sm:$0xf]
      %v687 = vld [vmem:[#allocation11 + $0x38] sm:$0xf]
      %v688 = vld [vmem:[#allocation11 + $0x3c] sm:$0xf]
      %v689 = vld [vmem:[%s6] sm:$0x1]
      %v691 = vlaneseq
      %v692 = vshrl.u32 %v691, 7
      %v693 = vsub.s32 0, %v692
      %v694 = vrot.slane %v689, %v693
      %v712 = vunpack.c.l.b16 %v673
      %v713 = vunpack.c.l.b16 %v674
      %v714 = vunpack.c.l.b16 %v675
      %v715 = vunpack.c.l.b16 %v676
      %v716 = vunpack.c.l.b16 %v677
      %v717 = vunpack.c.l.b16 %v678
      %v718 = vunpack.c.l.b16 %v679
      %v719 = vunpack.c.l.b16 %v680
      %v720 = vunpack.c.l.b16 %v681
      %v721 = vunpack.c.l.b16 %v682
      %v722 = vunpack.c.l.b16 %v683
      %v723 = vunpack.c.l.b16 %v684
      %v724 = vunpack.c.l.b16 %v685
      %v725 = vunpack.c.l.b16 %v686
      %v726 = vunpack.c.l.b16 %v687
      %v727 = vunpack.c.l.b16 %v688
      %v728 = vpack.c.b16 %v713, %v712
      %v729 = vpack.c.b16 %v715, %v714
      %v730 = vpack.c.b16 %v717, %v716
      %v731 = vpack.c.b16 %v719, %v718
      %v732 = vpack.c.b16 %v721, %v720
      %v733 = vpack.c.b16 %v723, %v722
      %v734 = vpack.c.b16 %v725, %v724
      %v735 = vpack.c.b16 %v727, %v726
      %744 = vmatprep.subr.bf16.mxu0 0
      %745 = vmatpush1.bf16.msra.mxu0 %v735
      %746 = vmatprep.subr.bf16.mxu0 0
      %747 = vmatpush1.bf16.msra.mxu0 %v734
      %748 = vmatprep.subr.bf16.mxu0 0
      %749 = vmatpush1.bf16.msra.mxu0 %v733
      %750 = vmatprep.subr.bf16.mxu0 0
      %751 = vmatpush1.bf16.msra.mxu0 %v732
      %752 = vmatprep.subr.bf16.mxu0 0
      %753 = vmatpush1.bf16.msra.mxu0 %v731
      %754 = vmatprep.subr.bf16.mxu0 0
      %755 = vmatpush1.bf16.msra.mxu0 %v730
      %756 = vmatprep.subr.bf16.mxu0 0
      %757 = vmatpush1.bf16.msra.mxu0 %v729
      %758 = vmatprep.subr.bf16.mxu0 0
      %759 = vmatpush1.bf16.msra.mxu0 %v728
      %760 = vmatprep.subr.bf16.mxu0 0
      %761 = vmatpush2.bf16.msra.mxu0 0
      %762 = vmatprep.subr.bf16.mxu0 0
      %763 = vmatpush2.bf16.msra.mxu0 0
      %764 = vmatprep.subr.bf16.mxu0 0
      %765 = vmatpush2.bf16.msra.mxu0 0
      %766 = vmatprep.subr.bf16.mxu0 0
      %767 = vmatpush2.bf16.msra.mxu0 0
      %768 = vmatprep.subr.bf16.mxu0 0
      %769 = vmatpush2.bf16.msra.mxu0 0
      %770 = vmatprep.subr.bf16.mxu0 0
      %771 = vmatpush2.bf16.msra.mxu0 0
      %772 = vmatprep.subr.bf16.mxu0 0
      %773 = vmatpush2.bf16.msra.mxu0 0
      %774 = vmatprep.subr.bf16.mxu0 0
      %775 = vmatpush2.bf16.msra.mxu0 0
      %776 = vmatprep.mubr.bf16.mxu0 0
      %777 = vmatmul.mubr.bf16.gmra.mxu0 %v665
      %v778 = vpop.f32.mrf.mxu0
      %v779 = vadd.f32 %v694, %v778
      %v780 = vpop.f32.mrf.mxu0
      %v781 = vpop.f32.mrf.mxu0
      %v782 = vadd.f32 %v694, %v781
      %v783 = vpop.f32.mrf.mxu0
      %784 = vmatprep.mubr.bf16.mxu0 0
      %785 = vmatmul.mubr.bf16.gmra.mxu0 %v666
      %v786 = vpop.f32.mrf.mxu0
      %v787 = vadd.f32 %v694, %v786
      %v788 = vpop.f32.mrf.mxu0
      %v789 = vpop.f32.mrf.mxu0
      %v790 = vadd.f32 %v694, %v789
      %v791 = vpop.f32.mrf.mxu0
      %792 = vmatprep.mubr.bf16.mxu0 0
      %793 = vmatmul.mubr.bf16.gmra.mxu0 %v667
      %v794 = vpop.f32.mrf.mxu0
      %v795 = vadd.f32 %v694, %v794
      %v796 = vpop.f32.mrf.mxu0
      %v797 = vpop.f32.mrf.mxu0
      %v798 = vadd.f32 %v694, %v797
      %v799 = vpop.f32.mrf.mxu0
      %800 = vmatprep.mubr.bf16.mxu0 0
      %801 = vmatmul.mubr.bf16.gmra.mxu0 %v668
      %v802 = vpop.f32.mrf.mxu0
      %v803 = vadd.f32 %v694, %v802
      %v804 = vpop.f32.mrf.mxu0
      %v805 = vpop.f32.mrf.mxu0
      %v806 = vadd.f32 %v694, %v805
      %v807 = vpop.f32.mrf.mxu0
      %808 = vmatprep.mubr.bf16.mxu0 0
      %809 = vmatmul.mubr.bf16.gmra.mxu0 %v669
      %v810 = vpop.f32.mrf.mxu0
      %v811 = vadd.f32 %v694, %v810
      %v812 = vpop.f32.mrf.mxu0
      %v813 = vpop.f32.mrf.mxu0
      %v814 = vadd.f32 %v694, %v813
      %v815 = vpop.f32.mrf.mxu0
      %816 = vmatprep.mubr.bf16.mxu0 0
      %817 = vmatmul.mubr.bf16.gmra.mxu0 %v670
      %v818 = vpop.f32.mrf.mxu0
      %v819 = vadd.f32 %v694, %v818
      %v820 = vpop.f32.mrf.mxu0
      %v821 = vpop.f32.mrf.mxu0
      %v822 = vadd.f32 %v694, %v821
      %v823 = vpop.f32.mrf.mxu0
      %824 = vmatprep.mubr.bf16.mxu0 0
      %825 = vmatmul.mubr.bf16.gmra.mxu0 %v671
      %v826 = vpop.f32.mrf.mxu0
      %v827 = vadd.f32 %v694, %v826
      %v828 = vpop.f32.mrf.mxu0
      %v829 = vpop.f32.mrf.mxu0
      %v830 = vadd.f32 %v694, %v829
      %v831 = vpop.f32.mrf.mxu0
      %832 = vmatprep.mubr.bf16.mxu0 0
      %833 = vmatmul.mubr.bf16.gmra.mxu0 %v672
      %v834 = vpop.f32.mrf.mxu0
      %v835 = vadd.f32 %v694, %v834
      %v836 = vpop.f32.mrf.mxu0
      %v837 = vpop.f32.mrf.mxu0
      %v838 = vadd.f32 %v694, %v837
      %v839 = vpop.f32.mrf.mxu0
      %840 = vdwg.mxu0
      %v841 = vld [vmem:[#allocation12] sm:$0xf]
      %v842 = vld [vmem:[#allocation12 + $0x4] sm:$0xf]
      %v843 = vld [vmem:[#allocation12 + $0x8] sm:$0xf]
      %v844 = vld [vmem:[#allocation12 + $0xc] sm:$0xf]
      %v845 = vld [vmem:[#allocation12 + $0x10] sm:$0xf]
      %v846 = vld [vmem:[#allocation12 + $0x14] sm:$0xf]
      %v847 = vld [vmem:[#allocation12 + $0x18] sm:$0xf]
      %v848 = vld [vmem:[#allocation12 + $0x1c] sm:$0xf]
      %v849 = vld [vmem:[#allocation12 + $0x20] sm:$0xf]
      %v850 = vld [vmem:[#allocation12 + $0x24] sm:$0xf]
      %v851 = vld [vmem:[#allocation12 + $0x28] sm:$0xf]
      %v852 = vld [vmem:[#allocation12 + $0x2c] sm:$0xf]
      %v853 = vld [vmem:[#allocation12 + $0x30] sm:$0xf]
      %v854 = vld [vmem:[#allocation12 + $0x34] sm:$0xf]
      %v855 = vld [vmem:[#allocation12 + $0x38] sm:$0xf]
      %v856 = vld [vmem:[#allocation12 + $0x3c] sm:$0xf]
      %v873 = vunpack.c.l.b16 %v409
      %v874 = vunpack.c.l.b16 %v410
      %v875 = vunpack.c.l.b16 %v411
      %v876 = vunpack.c.l.b16 %v412
      %v877 = vunpack.c.l.b16 %v413
      %v878 = vunpack.c.l.b16 %v414
      %v879 = vunpack.c.l.b16 %v415
      %v880 = vunpack.c.l.b16 %v416
      %v881 = vunpack.c.l.b16 %v417
      %v882 = vunpack.c.l.b16 %v418
      %v883 = vunpack.c.l.b16 %v419
      %v884 = vunpack.c.l.b16 %v420
      %v885 = vunpack.c.l.b16 %v421
      %v886 = vunpack.c.l.b16 %v422
      %v887 = vunpack.c.l.b16 %v423
      %v888 = vunpack.c.l.b16 %v424
      %v889 = vpack.c.b16 %v874, %v873
      %v890 = vpack.c.b16 %v876, %v875
      %v891 = vpack.c.b16 %v878, %v877
      %v892 = vpack.c.b16 %v880, %v879
      %v893 = vpack.c.b16 %v882, %v881
      %v894 = vpack.c.b16 %v884, %v883
      %v895 = vpack.c.b16 %v886, %v885
      %v896 = vpack.c.b16 %v888, %v887
      %v921 = vunpack.c.l.b16 %v841
      %v922 = vunpack.c.l.b16 %v842
      %v923 = vunpack.c.l.b16 %v843
      %v924 = vunpack.c.l.b16 %v844
      %v925 = vunpack.c.l.b16 %v845
      %v926 = vunpack.c.l.b16 %v846
      %v927 = vunpack.c.l.b16 %v847
      %v928 = vunpack.c.l.b16 %v848
      %v929 = vunpack.c.l.b16 %v849
      %v930 = vunpack.c.l.b16 %v850
      %v931 = vunpack.c.l.b16 %v851
      %v932 = vunpack.c.l.b16 %v852
      %v933 = vunpack.c.l.b16 %v853
      %v934 = vunpack.c.l.b16 %v854
      %v935 = vunpack.c.l.b16 %v855
      %v936 = vunpack.c.l.b16 %v856
      %v937 = vpack.c.b16 %v922, %v921
      %v938 = vpack.c.b16 %v924, %v923
      %v939 = vpack.c.b16 %v926, %v925
      %v940 = vpack.c.b16 %v928, %v927
      %v941 = vpack.c.b16 %v930, %v929
      %v942 = vpack.c.b16 %v932, %v931
      %v943 = vpack.c.b16 %v934, %v933
      %v944 = vpack.c.b16 %v936, %v935
      %953 = vmatprep.subr.bf16.mxu0 0
      %954 = vmatpush1.bf16.msra.mxu0 %v944
      %955 = vmatprep.subr.bf16.mxu0 0
      %956 = vmatpush1.bf16.msra.mxu0 %v943
      %957 = vmatprep.subr.bf16.mxu0 0
      %958 = vmatpush1.bf16.msra.mxu0 %v942
      %959 = vmatprep.subr.bf16.mxu0 0
      %960 = vmatpush1.bf16.msra.mxu0 %v941
      %961 = vmatprep.subr.bf16.mxu0 0
      %962 = vmatpush1.bf16.msra.mxu0 %v940
      %963 = vmatprep.subr.bf16.mxu0 0
      %964 = vmatpush1.bf16.msra.mxu0 %v939
      %965 = vmatprep.subr.bf16.mxu0 0
      %966 = vmatpush1.bf16.msra.mxu0 %v938
      %967 = vmatprep.subr.bf16.mxu0 0
      %968 = vmatpush1.bf16.msra.mxu0 %v937
      %969 = vmatprep.subr.bf16.mxu0 0
      %970 = vmatpush2.bf16.msra.mxu0 0
      %971 = vmatprep.subr.bf16.mxu0 0
      %972 = vmatpush2.bf16.msra.mxu0 0
      %973 = vmatprep.subr.bf16.mxu0 0
      %974 = vmatpush2.bf16.msra.mxu0 0
      %975 = vmatprep.subr.bf16.mxu0 0
      %976 = vmatpush2.bf16.msra.mxu0 0
      %977 = vmatprep.subr.bf16.mxu0 0
      %978 = vmatpush2.bf16.msra.mxu0 0
      %979 = vmatprep.subr.bf16.mxu0 0
      %980 = vmatpush2.bf16.msra.mxu0 0
      %981 = vmatprep.subr.bf16.mxu0 0
      %982 = vmatpush2.bf16.msra.mxu0 0
      %983 = vmatprep.subr.bf16.mxu0 0
      %984 = vmatpush2.bf16.msra.mxu0 0
      %985 = vmatprep.mubr.bf16.mxu0 0
      %986 = vmatmul.mubr.bf16.gmra.mxu0 %v889
      %v987 = vpop.f32.mrf.mxu0
      %v988 = vadd.f32 0.0, %v987
      %v989 = vpop.f32.mrf.mxu0
      %v990 = vpop.f32.mrf.mxu0
      %v991 = vadd.f32 0.0, %v990
      %v992 = vpop.f32.mrf.mxu0
      %993 = vmatprep.mubr.bf16.mxu0 0
      %994 = vmatmul.mubr.bf16.gmra.mxu0 %v890
      %v995 = vpop.f32.mrf.mxu0
      %v996 = vadd.f32 0.0, %v995
      %v997 = vpop.f32.mrf.mxu0
      %v998 = vpop.f32.mrf.mxu0
      %v999 = vadd.f32 0.0, %v998
      %v1000 = vpop.f32.mrf.mxu0
      %1001 = vmatprep.mubr.bf16.mxu0 0
      %1002 = vmatmul.mubr.bf16.gmra.mxu0 %v891
      %v1003 = vpop.f32.mrf.mxu0
      %v1004 = vadd.f32 0.0, %v1003
      %v1005 = vpop.f32.mrf.mxu0
      %v1006 = vpop.f32.mrf.mxu0
      %v1007 = vadd.f32 0.0, %v1006
      %v1008 = vpop.f32.mrf.mxu0
      %1009 = vmatprep.mubr.bf16.mxu0 0
      %1010 = vmatmul.mubr.bf16.gmra.mxu0 %v892
      %v1011 = vpop.f32.mrf.mxu0
      %v1012 = vadd.f32 0.0, %v1011
      %v1013 = vpop.f32.mrf.mxu0
      %v1014 = vpop.f32.mrf.mxu0
      %v1015 = vadd.f32 0.0, %v1014
      %v1016 = vpop.f32.mrf.mxu0
      %1017 = vmatprep.mubr.bf16.mxu0 0
      %1018 = vmatmul.mubr.bf16.gmra.mxu0 %v893
      %v1019 = vpop.f32.mrf.mxu0
      %v1020 = vadd.f32 0.0, %v1019
      %v1021 = vpop.f32.mrf.mxu0
      %v1022 = vpop.f32.mrf.mxu0
      %v1023 = vadd.f32 0.0, %v1022
      %v1024 = vpop.f32.mrf.mxu0
      %1025 = vmatprep.mubr.bf16.mxu0 0
      %1026 = vmatmul.mubr.bf16.gmra.mxu0 %v894
      %v1027 = vpop.f32.mrf.mxu0
      %v1028 = vadd.f32 0.0, %v1027
      %v1029 = vpop.f32.mrf.mxu0
      %v1030 = vpop.f32.mrf.mxu0
      %v1031 = vadd.f32 0.0, %v1030
      %v1032 = vpop.f32.mrf.mxu0
      %1033 = vmatprep.mubr.bf16.mxu0 0
      %1034 = vmatmul.mubr.bf16.gmra.mxu0 %v895
      %v1035 = vpop.f32.mrf.mxu0
      %v1036 = vadd.f32 0.0, %v1035
      %v1037 = vpop.f32.mrf.mxu0
      %v1038 = vpop.f32.mrf.mxu0
      %v1039 = vadd.f32 0.0, %v1038
      %v1040 = vpop.f32.mrf.mxu0
      %1041 = vmatprep.mubr.bf16.mxu0 0
      %1042 = vmatmul.mubr.bf16.gmra.mxu0 %v896
      %v1043 = vpop.f32.mrf.mxu0
      %v1044 = vadd.f32 0.0, %v1043
      %v1045 = vpop.f32.mrf.mxu0
      %v1046 = vpop.f32.mrf.mxu0
      %v1047 = vadd.f32 0.0, %v1046
      %v1048 = vpop.f32.mrf.mxu0
      %1049 = vdwg.mxu0
      %v1050 = vadd.f32 %v779, %v988
      %v1051 = vadd.f32 %v782, %v991
      %v1052 = vadd.f32 %v787, %v996
      %v1053 = vadd.f32 %v790, %v999
      %v1054 = vadd.f32 %v795, %v1004
      %v1055 = vadd.f32 %v798, %v1007
      %v1056 = vadd.f32 %v803, %v1012
      %v1057 = vadd.f32 %v806, %v1015
      %v1058 = vadd.f32 %v811, %v1020
      %v1059 = vadd.f32 %v814, %v1023
      %v1060 = vadd.f32 %v819, %v1028
      %v1061 = vadd.f32 %v822, %v1031
      %v1062 = vadd.f32 %v827, %v1036
      %v1063 = vadd.f32 %v830, %v1039
      %v1064 = vadd.f32 %v835, %v1044
      %v1065 = vadd.f32 %v838, %v1047
      %1066 = vst [vmem:[#allocation14] sm:$0xff] %v1050
      %1067 = vst [vmem:[#allocation14 + $0x8] sm:$0xff] %v1051
      %1068 = vst [vmem:[#allocation14 + $0x10] sm:$0xff] %v1052
      %1069 = vst [vmem:[#allocation14 + $0x18] sm:$0xff] %v1053
      %1070 = vst [vmem:[#allocation14 + $0x20] sm:$0xff] %v1054
      %1071 = vst [vmem:[#allocation14 + $0x28] sm:$0xff] %v1055
      %1072 = vst [vmem:[#allocation14 + $0x30] sm:$0xff] %v1056
      %1073 = vst [vmem:[#allocation14 + $0x38] sm:$0xff] %v1057
      %1074 = vst [vmem:[#allocation14 + $0x40] sm:$0xff] %v1058
      %1075 = vst [vmem:[#allocation14 + $0x48] sm:$0xff] %v1059
      %1076 = vst [vmem:[#allocation14 + $0x50] sm:$0xff] %v1060
      %1077 = vst [vmem:[#allocation14 + $0x58] sm:$0xff] %v1061
      %1078 = vst [vmem:[#allocation14 + $0x60] sm:$0xff] %v1062
      %1079 = vst [vmem:[#allocation14 + $0x68] sm:$0xff] %v1063
      %1080 = vst [vmem:[#allocation14 + $0x70] sm:$0xff] %v1064
      %1081 = vst [vmem:[#allocation14 + $0x78] sm:$0xff] %v1065
    $region65: #{tpu_custom_call.1} parent=1 // pred_fallthru
      _
    // Predicated region
    $region66: #{tpu_custom_call.1} parent=1 // pred_check
      _
    $region67: #{tpu_custom_call.1} parent=1 // pred_check_branch
      %1083 = sbr.rel (0) target = $region69
    $region68: #{tpu_custom_call.1} parent=1 // pred_region
      %s1085 = ssub.s32 2048, 2048
      %1086 = vsyncadd [#allocation5], %s1085
      %s1087 = sshll.u32 [#allocation14], 4
      %s1088 = int_to_ptr.vmem [resolvable:$true] %s1087
      %1093 = dma.vmem_to_hbm [thread:$0]  %s1088, 2048, %s8, [#allocation5], 128, 128, 8
    $region69: #{tpu_custom_call.1} parent=1 // pred_fallthru
      _
    // Predicated region
    $region70: #{tpu_custom_call.1} parent=1 // pred_check
      _
    $region71: #{tpu_custom_call.1} parent=1 // pred_check_branch
      %1095 = sbr.rel (0) target = $region73
    $region72: #{tpu_custom_call.1} parent=1 // pred_region
      %1096 = dma.done [#allocation5], 2048
    $region73: #{tpu_custom_call.1} parent=1 // pred_fallthru
      _
    %1097 = vsyncpa [#allocation4], 1
    %1098 = vsyncpa [#allocation7], 1
    %1099 = vsyncpa [#allocation10], 1
    %1100 = vsyncpa [#allocation13], 1
    %1101 = vsyncpa [#allocation5], 1

</llo_original>
